<compile_context>
chip_gen: v5e
topology: v5e:2x2
jax: 0.10.0
libtpu: 0.0.40
codegen_flags: <defaults>
</compile_context>

<pallas_src>
import jax
import jax.numpy as jnp
from jax import lax
from jax.experimental import pallas as pl
from jax.experimental.pallas import tpu as pltpu


_TARGET_TILE_BYTES = 4 << 20   # ~4 MiB of raw input per grid step (all gens)
_VMEM_LIMIT_CAP = 56 << 20     # stay under v7x's 64 MiB physical VMEM


def _rmsnorm_kernel(x_ref, g_ref, o_ref):
    x = x_ref[...].astype(jnp.float32)              # (Bt, C, st), f32 math
    ss = jnp.sum(x * x, axis=1, keepdims=True)      # (Bt, 1, st) sublane reduce
    inv = lax.rsqrt(jnp.maximum(ss, 1e-24))         # EUP rsqrt; no divide
    # g_ref is (1, C, 1) with sqrt(dim) already folded in.
    o_ref[...] = (x * inv * g_ref[...]).astype(o_ref.dtype)


def _choose_tiling(B, C, S, itemsize, target_bytes=_TARGET_TILE_BYTES):
    """Pick (Bt, st) so one grid step moves ~target_bytes of raw input.

    S must already be a multiple of 128. Either tile spatially (Bt=1, wide st)
    when a single batch row is large, or fold several batch rows into one step
    (st=S) when rows are small, so low-resolution stages still amortize the
    fixed per-step overhead.
    """
    row_bytes = C * S * itemsize
    if row_bytes >= target_bytes:
        bt = 1
        lanes_budget = max(128, (target_bytes // (C * itemsize)) // 128 * 128)
        st = min(lanes_budget, S)
        while S % st:
            st -= 128
    else:
        st = S
        bt = min(B, max(1, target_bytes // row_bytes))
        while B % bt:
            bt -= 1
    return bt, st


def rms_norm(x, g, out_dtype=None):
    """x: (B, C, H, W); g: (1, C, 1, 1) -> F.normalize(x, dim=1) * g * sqrt(C)."""
    B, C, H, W = x.shape
    S = H * W
    out_dtype = x.dtype if out_dtype is None else out_dtype

    # Pad S up to a lane-dense multiple of 128 (avoids masked partial stores).
    S_pad = ((S + 127) // 128) * 128
    x3 = x.reshape(B, C, S)
    if S_pad != S:
        x3 = jnp.pad(x3, ((0, 0), (0, 0), (0, S_pad - S)))

    # Fold the constant sqrt(dim) into g so the kernel does a single multiply.
    g2 = g.reshape(1, C, 1).astype(jnp.float32) * (C ** 0.5)

    bt, st = _choose_tiling(B, C, S_pad, jnp.dtype(x.dtype).itemsize)

    # Resident VMEM estimate: C pads to the next multiple of 8 sublanes, and
    # input + output are each double-buffered (~4x one padded f32 tile).
    padded_c = ((C + 7) // 8) * 8
    tile_vmem_bytes = bt * padded_c * st * 4
    vmem_limit = int(4 * tile_vmem_bytes + (4 << 20))
    vmem_limit = max(32 << 20, min(vmem_limit, _VMEM_LIMIT_CAP))

    out = pl.pallas_call(
        _rmsnorm_kernel,
        out_shape=jax.ShapeDtypeStruct((B, C, S_pad), out_dtype),
        grid=(B // bt, S_pad // st),
        in_specs=[
            pl.BlockSpec((bt, C, st), lambda b, s: (b, 0, s)),   # x tile
            pl.BlockSpec((1, C, 1), lambda b, s: (0, 0, 0)),     # g (tiny, const)
        ],
        out_specs=pl.BlockSpec((bt, C, st), lambda b, s: (b, 0, s)),
        compiler_params=pltpu.CompilerParams(
            dimension_semantics=("parallel", "parallel"),
            vmem_limit_bytes=vmem_limit),
    )(x3, g2)

    if S_pad != S:
        out = out[:, :, :S]
    return out.reshape(B, C, H, W)


def pre_norm(x, g, fn=None, out_dtype=None):
    """PreNorm.forward: fn(RMSNorm(x))."""
    y = rms_norm(x, g, out_dtype=out_dtype)
    # TODO(synk): `fn` is an arbitrary wrapped module in the PyTorch PreNorm;
    # it is applied here as a plain JAX callable (ideally the norm would be
    # fused into fn's first kernel to avoid the extra HBM round trip).
    return fn(y) if fn is not None else y


def reference(x, g):
    C = x.shape[1]
    l2 = jnp.sqrt(jnp.sum(x * x, axis=1, keepdims=True))
    return x / jnp.maximum(l2, 1e-12) * g * (C ** 0.5)


if __name__ == "__main__":
    key = jax.random.PRNGKey(0)
    kx, kg, kx2 = jax.random.split(key, 3)

    B, C, H, W = 2, 4, 16, 16
    x = jax.random.normal(kx, (B, C, H, W), jnp.float32)
    # PyTorch initializes g to ones; use non-trivial values so the per-channel
    # broadcast path is exercised numerically.
    g = 1.0 + 0.1 * jax.random.normal(kg, (1, C, 1, 1), jnp.float32)

    out = pre_norm(x, g, fn=lambda y: y)   # fn = identity for the test
    jax.block_until_ready(out)
    ref = reference(x, g)
    assert out.shape == (B, C, H, W)
    assert jnp.allclose(out, ref, atol=1e-5, rtol=1e-5), "mismatch vs JAX reference"

    # Exercise the ragged-spatial path (S = 100 padded to 128, then sliced).
    x2 = jax.random.normal(kx2, (2, C, 10, 10), jnp.float32)
    out2 = pre_norm(x2, g, fn=lambda y: y)
    jax.block_until_ready(out2)
    ref2 = reference(x2, g)
    assert out2.shape == x2.shape
    assert jnp.allclose(out2, ref2, atol=1e-5, rtol=1e-5), "mismatch (padded S)"

    print("KERNEL_OK")
</pallas_src>

<mosaic_0001>
module attributes {stable_mosaic.version = 11 : i64} {
  func.func @_rmsnorm_kernel(%arg0: i32, %arg1: i32, %arg2: memref<2x4x256xf32, #tpu.memory_space<vmem>>, %arg3: memref<1x4x1xf32, #tpu.memory_space<vmem>>, %arg4: memref<2x4x256xf32, #tpu.memory_space<vmem>>) attributes {dimension_semantics = [#tpu.dimension_semantics<parallel>, #tpu.dimension_semantics<parallel>], iteration_bounds = array<i64: 1, 1>, scalar_prefetch = 0 : i64, scratch_operands = 0 : i64, tpu.core_type = #tpu.core_type<tc>, window_params = [{transform_indices = @transform_0, window_bounds = array<i64: 2, 4, 256>}, {pipeline_mode = #tpu.pipeline_mode<synchronous>, transform_indices = @transform_1, window_bounds = array<i64: 1, 4, 1>}, {transform_indices = @transform_2, window_bounds = array<i64: 2, 4, 256>}]} {
    %c0 = arith.constant 0 : index
    %c0_0 = arith.constant 0 : index
    %c0_1 = arith.constant 0 : index
    %0 = vector.load %arg2[%c0, %c0_0, %c0_1] : memref<2x4x256xf32, #tpu.memory_space<vmem>>, vector<2x4x256xf32>
    %1 = arith.mulf %0, %0 : vector<2x4x256xf32>
    %cst = arith.constant dense<0.000000e+00> : vector<2x256xf32>
    %2 = vector.multi_reduction <add>, %1, %cst [1] : vector<2x4x256xf32> to vector<2x256xf32>
    %3 = vector.shape_cast %2 : vector<2x256xf32> to vector<2x1x256xf32>
    %cst_2 = arith.constant 1.000000e-24 : f32
    %4 = vector.broadcast %cst_2 : f32 to vector<2x1x256xf32>
    %5 = arith.maximumf %3, %4 : vector<2x1x256xf32>
    %6 = math.rsqrt %5 : vector<2x1x256xf32>
    %7 = vector.broadcast %6 : vector<2x1x256xf32> to vector<2x4x256xf32>
    %8 = arith.mulf %0, %7 : vector<2x4x256xf32>
    %c0_3 = arith.constant 0 : index
    %c0_4 = arith.constant 0 : index
    %c0_5 = arith.constant 0 : index
    %9 = vector.load %arg3[%c0_3, %c0_4, %c0_5] : memref<1x4x1xf32, #tpu.memory_space<vmem>>, vector<1x4x1xf32>
    %10 = vector.broadcast %9 : vector<1x4x1xf32> to vector<2x4x256xf32>
    %11 = arith.mulf %8, %10 : vector<2x4x256xf32>
    %c0_6 = arith.constant 0 : index
    %c0_7 = arith.constant 0 : index
    %c0_8 = arith.constant 0 : index
    %12 = vector.load %arg4[%c0_6, %c0_7, %c0_8] : memref<2x4x256xf32, #tpu.memory_space<vmem>>, vector<2x4x256xf32>
    tpu.vector_store %arg4[%c0_6, %c0_7, %c0_8], %11 {strides = array<i32>} : memref<2x4x256xf32, #tpu.memory_space<vmem>>, vector<2x4x256xf32>,
    return
  }
  func.func @transform_0(%arg0: i32, %arg1: i32) -> (i32, i32, i32) {
    %c0_i32 = arith.constant 0 : i32
    %c0_i32_0 = arith.constant 0 : i32
    return %arg0, %c0_i32, %arg1 : i32, i32, i32
  }
  func.func @transform_1(%arg0: i32, %arg1: i32) -> (i32, i32, i32) {
    %c0_i32 = arith.constant 0 : i32
    %c0_i32_0 = arith.constant 0 : i32
    %c0_i32_1 = arith.constant 0 : i32
    %c0_i32_2 = arith.constant 0 : i32
    return %c0_i32, %c0_i32_0, %c0_i32_1 : i32, i32, i32
  }
  func.func @transform_2(%arg0: i32, %arg1: i32) -> (i32, i32, i32) {
    %c0_i32 = arith.constant 0 : i32
    %c0_i32_0 = arith.constant 0 : i32
    return %arg0, %c0_i32, %arg1 : i32, i32, i32
  }
}

</mosaic_0001>

<llo_original>
// kernel: tpu_custom_call.1
$region0: #{tpu_custom_call.1}
  #allocation0 [shape = 'u32[]', space=smem, size = 0x4, offset = 0x4, fixed_abs, tag = 'smem constant byte address 0x4 - core index']
  #allocation1 [shape = 'u32[72,128]{1,0:T(1,128)}', space=vmem, size = 0x9000, scoped, tag = 'internal scratch']
  %s0 = inlined_call_operand.hbm [shape: f32[2,4,256], index: 0, kind: input, shape index: {}]
  %s1 = inlined_call_operand.vmem [shape: f32[1,4,1], index: 1, kind: input, shape index: {}]
  %s2 = inlined_call_operand.hbm [shape: f32[2,4,256], index: 2, kind: output, shape index: {}]
  %s3 = sld [smem:[#allocation0]]
  $region22: #{tpu_custom_call.1} parent=0
    _
  %s5 = ssub.s32 1, %s3
  %s6 = scalar_select 0, %s5, %s3
  $region1: #{tpu_custom_call.1} parent=0
    #allocation2 [shape = 'u8[8192]{0}', space=vmem, size = 0x2000, scoped, tag = 'input window, operand 0, single buffered']
    #allocation3 [shape = 's32[1]{0}', space=sflag, size = 0x4, scoped, tag = 'scoped memory for tpu_custom_call.1']
    #allocation4 [shape = 's32[1]{0}', space=sflag, size = 0x4, scoped, tag = 'scoped memory for tpu_custom_call.1']
    #allocation5 [shape = 'u8[8192]{0}', space=vmem, size = 0x2000, scoped, tag = 'output window, operand 0, single buffered']
    %7 = vsyncpa [#allocation3], 0
    %8 = vsyncpa [#allocation4], 0
    // Predicated region
    $region2: #{tpu_custom_call.1} parent=1 // pred_check
      _
    $region3: #{tpu_custom_call.1} parent=1 // pred_check_branch
      %10 = sbr.rel (0) target = $region5
    $region4: #{tpu_custom_call.1} parent=1 // pred_region
      %12 = vsyncadd [#allocation3], 0
      %s13 = sshll.u32 %s0, 4
      %s14 = int_to_ptr.hbm [resolvable:$true] %s13
      %s15 = sshll.u32 [#allocation2], 4
      %s16 = int_to_ptr.vmem [resolvable:$true] %s15
      %21 = dma.hbm_to_vmem [thread:$0]  %s14, 256, %s16, [#allocation3], 128, 128, 8
    $region5: #{tpu_custom_call.1} parent=1 // pred_fallthru
      _
    // Predicated region
    $region6: #{tpu_custom_call.1} parent=1 // pred_check
      _
    $region7: #{tpu_custom_call.1} parent=1 // pred_check_branch
      %23 = sbr.rel (0) target = $region9
    $region8: #{tpu_custom_call.1} parent=1 // pred_region
      _
    $region9: #{tpu_custom_call.1} parent=1 // pred_fallthru
      _
    // Predicated region
    $region10: #{tpu_custom_call.1} parent=1 // pred_check
      _
    $region11: #{tpu_custom_call.1} parent=1 // pred_check_branch
      %25 = sbr.rel (0) target = $region13
    $region12: #{tpu_custom_call.1} parent=1 // pred_region
      %27 = dma.done [#allocation3], 256
    $region13: #{tpu_custom_call.1} parent=1 // pred_fallthru
      _
    %v28 = vld [vmem:[#allocation2] sm:$0xff]
    %v29 = vld [vmem:[#allocation2 + $0x8] sm:$0xff]
    %v30 = vmul.f32 %v28, %v28
    %v31 = vmul.f32 %v29, %v29
    %34 = vst [vmem:[#allocation1] ss:$2 sm:$0xff] %v30
    %v35 = vld.sshfl [vmem:[#allocation1] sm:$0xff pattern:$0x75316420]
    %v36 = vld.sshfl [vmem:[#allocation1 + $0x8] sm:$0xff pattern:$0x75316420]
    %s37 = scalar_lea.vmem [#allocation1], 16
    %38 = vst [vmem:[%s37] ss:$2 sm:$0xff] %v31
    %v39 = vld.sshfl [vmem:[#allocation1 + $0x10] sm:$0xff pattern:$0x75316420]
    %v40 = vld.sshfl [vmem:[#allocation1 + $0x18] sm:$0xff pattern:$0x75316420]
    %vm45 = vcmask 1043456
    %v46 = vsel %vm45, %v35, 0.0
    %v47 = vrot.slane %v46, 4
    %v48 = vadd.f32 %v46, %v47
    %v49 = vrot.slane %v48, 2
    %v50 = vadd.f32 %v48, %v49
    %v51 = vrot.slane %v50, 1
    %v52 = vadd.f32 %v50, %v51
    %v53 = vsel %vm45, %v36, 0.0
    %v54 = vrot.slane %v53, 4
    %v55 = vadd.f32 %v53, %v54
    %v56 = vrot.slane %v55, 2
    %v57 = vadd.f32 %v55, %v56
    %v58 = vrot.slane %v57, 1
    %v59 = vadd.f32 %v57, %v58
    %v60 = vsel %vm45, %v39, 0.0
    %v61 = vrot.slane %v60, 4
    %v62 = vadd.f32 %v60, %v61
    %v63 = vrot.slane %v62, 2
    %v64 = vadd.f32 %v62, %v63
    %v65 = vrot.slane %v64, 1
    %v66 = vadd.f32 %v64, %v65
    %v67 = vsel %vm45, %v40, 0.0
    %v68 = vrot.slane %v67, 4
    %v69 = vadd.f32 %v67, %v68
    %v70 = vrot.slane %v69, 2
    %v71 = vadd.f32 %v69, %v70
    %v72 = vrot.slane %v71, 1
    %v73 = vadd.f32 %v71, %v72
    %v74 = vmax.f32 %v52, 1e-24
    %v75 = vmax.f32 %v59, 1e-24
    %v76 = vmax.f32 %v66, 1e-24
    %v77 = vmax.f32 %v73, 1e-24
    %v78 = vrsqrt.pop %v74
    %v79 = vmul.f32 %v78, %v74
    %v80 = vmul.f32 %v79, %v78
    %v81 = vmul.f32 0.5, %v80
    %v82 = vsub.f32 1.5, %v81
    %v83 = vmul.f32 %v78, %v82
    %vm84 = vweird.f32 %v74
    %vm85 = vweird.f32 %v78
    %vm86 = vmor %vm84, %vm85
    %v87 = vsel %vm86, %v78, %v83
    %v88 = vrsqrt.pop %v75
    %v89 = vmul.f32 %v88, %v75
    %v90 = vmul.f32 %v89, %v88
    %v91 = vmul.f32 0.5, %v90
    %v92 = vsub.f32 1.5, %v91
    %v93 = vmul.f32 %v88, %v92
    %vm94 = vweird.f32 %v75
    %vm95 = vweird.f32 %v88
    %vm96 = vmor %vm94, %vm95
    %v97 = vsel %vm96, %v88, %v93
    %v98 = vrsqrt.pop %v76
    %v99 = vmul.f32 %v98, %v76
    %v100 = vmul.f32 %v99, %v98
    %v101 = vmul.f32 0.5, %v100
    %v102 = vsub.f32 1.5, %v101
    %v103 = vmul.f32 %v98, %v102
    %vm104 = vweird.f32 %v76
    %vm105 = vweird.f32 %v98
    %vm106 = vmor %vm104, %vm105
    %v107 = vsel %vm106, %v98, %v103
    %v108 = vrsqrt.pop %v77
    %v109 = vmul.f32 %v108, %v77
    %v110 = vmul.f32 %v109, %v108
    %v111 = vmul.f32 0.5, %v110
    %v112 = vsub.f32 1.5, %v111
    %v113 = vmul.f32 %v108, %v112
    %vm114 = vweird.f32 %v77
    %vm115 = vweird.f32 %v108
    %vm116 = vmor %vm114, %vm115
    %v117 = vsel %vm116, %v108, %v113
    %v122 = vrot.slane %v97, 4
    %v123 = vrot.slane %v117, 4
    %v124 = vsel %vm45, %v87, %v122
    %v125 = vsel %vm45, %v107, %v123
    %v128 = vmul.f32 %v28, %v124
    %v129 = vmul.f32 %v29, %v125
    %v130 = vld [vmem:[%s1] sm:$0xf]
    %132 = vset.pattern.permute.xlu0 0
    %133 = vperm.xlu0 %132, %v130
    %v134 = vpop.permute.xlu0 %133
    %v136 = vunpack.c.l.s4 839922192
    %v137 = vunpack.c.0.s8 %v136
    %v138 = vperm.slane %v134, %v137
    %v140 = vmul.f32 %v128, %v138
    %v141 = vmul.f32 %v129, %v138
    %142 = vst [vmem:[#allocation5] sm:$0xff] %v140
    %143 = vst [vmem:[#allocation5 + $0x8] sm:$0xff] %v141
    // Predicated region
    $region14: #{tpu_custom_call.1} parent=1 // pred_check
      _
    $region15: #{tpu_custom_call.1} parent=1 // pred_check_branch
      %145 = sbr.rel (0) target = $region17
    $region16: #{tpu_custom_call.1} parent=1 // pred_region
      %147 = vsyncadd [#allocation4], 0
      %s148 = sshll.u32 [#allocation5], 4
      %s149 = int_to_ptr.vmem [resolvable:$true] %s148
      %s150 = sshll.u32 %s2, 4
      %s151 = int_to_ptr.hbm [resolvable:$true] %s150
      %156 = dma.vmem_to_hbm [thread:$0]  %s149, 256, %s151, [#allocation4], 128, 128, 8
    $region17: #{tpu_custom_call.1} parent=1 // pred_fallthru
      _
    // Predicated region
    $region18: #{tpu_custom_call.1} parent=1 // pred_check
      _
    $region19: #{tpu_custom_call.1} parent=1 // pred_check_branch
      %158 = sbr.rel (0) target = $region21
    $region20: #{tpu_custom_call.1} parent=1 // pred_region
      %160 = dma.done [#allocation4], 256
    $region21: #{tpu_custom_call.1} parent=1 // pred_fallthru
      _
    %161 = vsyncpa [#allocation3], 1
    %162 = vsyncpa [#allocation4], 1

</llo_original>
